<compile_context>
chip_gen: v5e
topology: v5e:2x2
jax: 0.10.0
libtpu: 0.0.40
codegen_flags: <defaults>
</compile_context>

<pallas_src>
import functools

import jax
import jax.numpy as jnp
from jax.experimental import pallas as pl
from jax.experimental.pallas import tpu as pltpu

_LANE = 128


def _query_vmem_capacity_bytes():
    """Per-TensorCore VMEM capacity; conservative fallback if the query fails."""
    try:
        info = pltpu.get_tpu_info()
        for name in ("vmem_capacity_bytes", "vmem_bytes", "vmem_size_bytes"):
            v = getattr(info, name, None)
            if v:
                return int(v)
    except Exception:
        pass
    return 64 << 20  # v7x per-TC size: smallest across v5e/v6e/v7x -> safe everywhere


def _pick_tile_rows(rows, width, io_bytes, *, vmem_budget, f32_temps=4):
    """Largest sublane-aligned row tile whose pipelined working set fits the budget."""
    # Per-row bytes: double-buffered input + double-buffered output (io dtype)
    # plus `f32_temps` tile-sized f32 intermediates inside the kernel body.
    per_row = width * (4 * io_bytes + 4 * f32_temps)
    tm = max(int(vmem_budget // max(per_row, 1)), 1)
    tm = min(tm, rows)
    if rows >= 8:
        tm = max(8, (tm // 8) * 8)  # sublane alignment
    else:
        tm = rows                   # full extent is always a legal block
    # Ensure >=2 grid steps so both v7x TensorCores get work (near-free on 1-TC chips).
    if rows >= 16:
        tm = min(tm, max(8, ((rows // 2) // 8) * 8))
    return tm


def _stats_rows(x, inv_h):
    # Two-pass per-row statistics over the full (lane-contiguous) last axis, in f32.
    mean = jnp.sum(x, axis=-1, keepdims=True) * inv_h
    d = x - mean
    var = jnp.sum(d * d, axis=-1, keepdims=True) * inv_h
    return d, var


def _stats_packed(x, seg, inv_h):
    # Segmented two-pass statistics for lane-packed rows.  `seg` is a (W, W) block-
    # diagonal ones matrix whose hidden x hidden blocks sum each packed logical row
    # and broadcast the result back across that row's lanes (runs on the idle MXU).
    mean = jnp.dot(x, seg, preferred_element_type=jnp.float32) * inv_h
    d = x - mean
    var = jnp.dot(d * d, seg, preferred_element_type=jnp.float32) * inv_h
    return d, var


def _ln_kernel_bias(x_ref, w_ref, b_ref, o_ref, *, eps, inv_h):
    x = x_ref[...].astype(jnp.float32)
    d, var = _stats_rows(x, inv_h)
    y = d * jax.lax.rsqrt(var + eps)  # EUP rsqrt: free slot in an HBM-bound kernel
    o_ref[...] = (y * w_ref[...].astype(jnp.float32)
                  + b_ref[...].astype(jnp.float32)).astype(o_ref.dtype)


def _ln_kernel_nobias(x_ref, w_ref, o_ref, *, eps, inv_h):
    x = x_ref[...].astype(jnp.float32)
    d, var = _stats_rows(x, inv_h)
    y = d * jax.lax.rsqrt(var + eps)
    o_ref[...] = (y * w_ref[...].astype(jnp.float32)).astype(o_ref.dtype)


def _ln_kernel_packed_bias(x_ref, w_ref, b_ref, seg_ref, o_ref, *, eps, inv_h):
    x = x_ref[...].astype(jnp.float32)
    d, var = _stats_packed(x, seg_ref[...], inv_h)
    y = d * jax.lax.rsqrt(var + eps)
    o_ref[...] = (y * w_ref[...].astype(jnp.float32)
                  + b_ref[...].astype(jnp.float32)).astype(o_ref.dtype)


def _ln_kernel_packed_nobias(x_ref, w_ref, seg_ref, o_ref, *, eps, inv_h):
    x = x_ref[...].astype(jnp.float32)
    d, var = _stats_packed(x, seg_ref[...], inv_h)
    y = d * jax.lax.rsqrt(var + eps)
    o_ref[...] = (y * w_ref[...].astype(jnp.float32)).astype(o_ref.dtype)


def layer_norm(x, weight, bias=None, eps=1e-5, *, block_rows=None):
    """Pallas LayerNorm matching F.layer_norm(input, weight.shape, weight, bias, eps)."""
    orig_shape = x.shape
    hidden = int(weight.shape[0])
    assert orig_shape[-1] == hidden, "last dim must equal ndim"

    rows = 1
    for d in orig_shape[:-1]:
        rows *= int(d)
    rows = max(rows, 1)

    io_bytes = jnp.dtype(x.dtype).itemsize
    has_bias = bias is not None

    # Lane-dense packing for small hidden: pack k = 128 // hidden logical rows per
    # 128-lane physical row so loads/stores are unmasked (no vst.msk tails).
    pack_k = 1
    if hidden < _LANE and _LANE % hidden == 0:
        k = _LANE // hidden
        if rows % k == 0:
            pack_k = k
    # TODO(synk): hidden that neither divides nor is a multiple of 128 still lowers to
    # (partially) masked stores; a general repacking path is not implemented.

    width = hidden * pack_k
    rows_p = rows // pack_k
    x2 = x.reshape(rows_p, width)

    if pack_k > 1:
        w2 = jnp.tile(weight.reshape(1, hidden), (1, pack_k))
        b2 = jnp.tile(bias.reshape(1, hidden), (1, pack_k)) if has_bias else None
        lane_seg = jnp.arange(width, dtype=jnp.int32) // hidden
        seg = (lane_seg[:, None] == lane_seg[None, :]).astype(jnp.float32)
    else:
        w2 = weight.reshape(1, hidden)
        b2 = bias.reshape(1, hidden) if has_bias else None
        seg = None

    # Generation-aware VMEM sizing.
    vmem_cap = _query_vmem_capacity_bytes()
    vmem_budget = int(vmem_cap * 0.55)              # tile working-set budget (per TC)
    vmem_limit = max(32 << 20, int(vmem_cap * 0.75))  # 96 MiB on v5e/v6e, 48 MiB on v7x

    f32_temps = 6 if pack_k > 1 else 4  # packed path keeps two matmul results live
    if block_rows is None:
        tm = _pick_tile_rows(rows_p, width, io_bytes,
                             vmem_budget=vmem_budget, f32_temps=f32_temps)
    else:
        tm = int(min(block_rows, rows_p))
        if rows_p >= 8:
            tm = max(8, (tm // 8) * 8)
        else:
            tm = rows_p

    # cdiv grid: partial last block is safe (reduction axis is fully inside the block,
    # out-of-range rows are masked on write). Keeps pipelining + megacore sharding.
    grid = (pl.cdiv(rows_p, tm),)

    inv_h = 1.0 / float(hidden)
    if pack_k > 1:
        body = _ln_kernel_packed_bias if has_bias else _ln_kernel_packed_nobias
    else:
        body = _ln_kernel_bias if has_bias else _ln_kernel_nobias
    kernel = functools.partial(body, eps=float(eps), inv_h=inv_h)

    in_specs = [
        pl.BlockSpec((tm, width), lambda i: (i, 0)),   # x tile (pipelined)
        pl.BlockSpec((1, width), lambda i: (0, 0)),    # weight (resident)
    ]
    inputs = [x2, w2]
    if has_bias:
        in_specs.append(pl.BlockSpec((1, width), lambda i: (0, 0)))  # bias (resident)
        inputs.append(b2)
    if pack_k > 1:
        in_specs.append(pl.BlockSpec((width, width), lambda i: (0, 0)))  # seg matrix
        inputs.append(seg)

    cost = pl.CostEstimate(
        flops=8 * rows * hidden + (4 * rows_p * width * width if pack_k > 1 else 0),
        transcendentals=rows,
        bytes_accessed=2 * rows * hidden * io_bytes
        + (2 if has_bias else 1) * hidden * io_bytes,
    )

    out2 = pl.pallas_call(
        kernel,
        out_shape=jax.ShapeDtypeStruct((rows_p, width), x.dtype),
        grid_spec=pltpu.PrefetchScalarGridSpec(
            num_scalar_prefetch=0,
            grid=grid,
            in_specs=in_specs,
            out_specs=pl.BlockSpec((tm, width), lambda i: (i, 0)),
        ),
        compiler_params=pltpu.CompilerParams(
            dimension_semantics=("parallel",),
            vmem_limit_bytes=vmem_limit,
        ),
        cost_estimate=cost,
    )(*inputs)

    return out2.reshape(orig_shape)


def layer_norm_ref(x, weight, bias, eps=1e-5):
    xf = x.astype(jnp.float32)
    mean = jnp.mean(xf, axis=-1, keepdims=True)
    var = jnp.mean((xf - mean) ** 2, axis=-1, keepdims=True)
    y = (xf - mean) * jax.lax.rsqrt(var + eps)
    if bias is None:
        bias = jnp.zeros_like(weight)
    return (y * weight + bias).astype(x.dtype)


if __name__ == "__main__":
    key = jax.random.PRNGKey(0)

    # --- small hidden (32): exercises the lane-dense packed path (k = 4) -------------
    batch, seq, hidden = 2, 8, 32
    x = jax.random.normal(key, (batch, seq, hidden), dtype=jnp.float32)

    # Deterministic parameter init matching nn.Module __init__:
    # weight = ones(ndim), bias = zeros(ndim) (bias=True case)
    weight = jnp.ones((hidden,), dtype=jnp.float32)
    bias = jnp.zeros((hidden,), dtype=jnp.float32)

    out = jax.block_until_ready(layer_norm(x, weight, bias, eps=1e-5))
    ref = layer_norm_ref(x, weight, bias, eps=1e-5)
    assert out.shape == x.shape
    assert jnp.allclose(out, ref, atol=1e-5, rtol=1e-5), "mismatch vs reference (bias)"

    # bias=None specialization (LayerNorm(ndim, bias=False))
    out_nb = jax.block_until_ready(layer_norm(x, weight, None, eps=1e-5))
    ref_nb = layer_norm_ref(x, weight, None, eps=1e-5)
    assert jnp.allclose(out_nb, ref_nb, atol=1e-5, rtol=1e-5), "mismatch vs reference (no bias)"

    # --- hidden = 128: exercises the standard (unpacked) path + >=2-step grid --------
    key2 = jax.random.PRNGKey(0)
    hidden2 = 128
    x2 = jax.random.normal(key2, (batch, seq, hidden2), dtype=jnp.float32)
    w2 = jnp.ones((hidden2,), dtype=jnp.float32)
    b2 = jnp.zeros((hidden2,), dtype=jnp.float32)
    out2 = jax.block_until_ready(layer_norm(x2, w2, b2, eps=1e-5))
    ref2 = layer_norm_ref(x2, w2, b2, eps=1e-5)
    assert jnp.allclose(out2, ref2, atol=1e-5, rtol=1e-5), "mismatch vs reference (h=128)"

    print("KERNEL_OK")
</pallas_src>

<mosaic_0001>
module attributes {stable_mosaic.version = 11 : i64} {
  func.func @_ln_kernel_packed_bias(%arg0: i32, %arg1: memref<4x128xf32, #tpu.memory_space<vmem>>, %arg2: memref<1x128xf32, #tpu.memory_space<vmem>>, %arg3: memref<1x128xf32, #tpu.memory_space<vmem>>, %arg4: memref<128x128xf32, #tpu.memory_space<vmem>>, %arg5: memref<4x128xf32, #tpu.memory_space<vmem>>) attributes {dimension_semantics = [#tpu.dimension_semantics<parallel>], iteration_bounds = array<i64: 1>, scalar_prefetch = 0 : i64, scratch_operands = 0 : i64, tpu.core_type = #tpu.core_type<tc>, window_params = [{transform_indices = @transform_0, window_bounds = array<i64: 4, 128>}, {pipeline_mode = #tpu.pipeline_mode<synchronous>, transform_indices = @transform_1, window_bounds = array<i64: 1, 128>}, {pipeline_mode = #tpu.pipeline_mode<synchronous>, transform_indices = @transform_2, window_bounds = array<i64: 1, 128>}, {pipeline_mode = #tpu.pipeline_mode<synchronous>, transform_indices = @transform_3, window_bounds = array<i64: 128, 128>}, {transform_indices = @transform_4, window_bounds = array<i64: 4, 128>}]} {
    %c0 = arith.constant 0 : index
    %c0_0 = arith.constant 0 : index
    %0 = vector.load %arg1[%c0, %c0_0] : memref<4x128xf32, #tpu.memory_space<vmem>>, vector<4x128xf32>
    %c0_1 = arith.constant 0 : index
    %c0_2 = arith.constant 0 : index
    %1 = vector.load %arg4[%c0_1, %c0_2] : memref<128x128xf32, #tpu.memory_space<vmem>>, vector<128x128xf32>
    %cst = arith.constant dense<0.000000e+00> : vector<4x128xf32>
    %2 = tpu.matmul %0, %1, %cst {dimension_numbers = #tpu.dot_dimension_numbers<[1], [0], [0], [1], [0, 0, 1, 1], [], []>} : vector<4x128xf32>, vector<128x128xf32>, vector<4x128xf32> -> vector<4x128xf32>
    %cst_3 = arith.constant 3.125000e-02 : f32
    %3 = vector.broadcast %cst_3 : f32 to vector<4x128xf32>
    %4 = arith.mulf %2, %3 : vector<4x128xf32>
    %5 = arith.subf %0, %4 : vector<4x128xf32>
    %6 = arith.mulf %5, %5 : vector<4x128xf32>
    %cst_4 = arith.constant dense<0.000000e+00> : vector<4x128xf32>
    %7 = tpu.matmul %6, %1, %cst_4 {dimension_numbers = #tpu.dot_dimension_numbers<[1], [0], [0], [1], [0, 0, 1, 1], [], []>} : vector<4x128xf32>, vector<128x128xf32>, vector<4x128xf32> -> vector<4x128xf32>
    %cst_5 = arith.constant 3.125000e-02 : f32
    %8 = vector.broadcast %cst_5 : f32 to vector<4x128xf32>
    %9 = arith.mulf %7, %8 : vector<4x128xf32>
    %cst_6 = arith.constant 9.99999974E-6 : f32
    %10 = vector.broadcast %cst_6 : f32 to vector<4x128xf32>
    %11 = arith.addf %9, %10 : vector<4x128xf32>
    %12 = math.rsqrt %11 : vector<4x128xf32>
    %13 = arith.mulf %5, %12 : vector<4x128xf32>
    %c0_7 = arith.constant 0 : index
    %c0_8 = arith.constant 0 : index
    %14 = vector.load %arg2[%c0_7, %c0_8] : memref<1x128xf32, #tpu.memory_space<vmem>>, vector<1x128xf32>
    %15 = vector.broadcast %14 : vector<1x128xf32> to vector<4x128xf32>
    %16 = arith.mulf %13, %15 : vector<4x128xf32>
    %c0_9 = arith.constant 0 : index
    %c0_10 = arith.constant 0 : index
    %17 = vector.load %arg3[%c0_9, %c0_10] : memref<1x128xf32, #tpu.memory_space<vmem>>, vector<1x128xf32>
    %18 = vector.broadcast %17 : vector<1x128xf32> to vector<4x128xf32>
    %19 = arith.addf %16, %18 : vector<4x128xf32>
    %c0_11 = arith.constant 0 : index
    %c0_12 = arith.constant 0 : index
    %20 = vector.load %arg5[%c0_11, %c0_12] : memref<4x128xf32, #tpu.memory_space<vmem>>, vector<4x128xf32>
    tpu.vector_store %arg5[%c0_11, %c0_12], %19 {strides = array<i32>} : memref<4x128xf32, #tpu.memory_space<vmem>>, vector<4x128xf32>,
    return
  }
  func.func @transform_0(%arg0: i32) -> (i32, i32) {
    %c0_i32 = arith.constant 0 : i32
    %c0_i32_0 = arith.constant 0 : i32
    return %arg0, %c0_i32 : i32, i32
  }
  func.func @transform_1(%arg0: i32) -> (i32, i32) {
    %c0_i32 = arith.constant 0 : i32
    %c0_i32_0 = arith.constant 0 : i32
    %c0_i32_1 = arith.constant 0 : i32
    return %c0_i32, %c0_i32_0 : i32, i32
  }
  func.func @transform_2(%arg0: i32) -> (i32, i32) {
    %c0_i32 = arith.constant 0 : i32
    %c0_i32_0 = arith.constant 0 : i32
    %c0_i32_1 = arith.constant 0 : i32
    return %c0_i32, %c0_i32_0 : i32, i32
  }
  func.func @transform_3(%arg0: i32) -> (i32, i32) {
    %c0_i32 = arith.constant 0 : i32
    %c0_i32_0 = arith.constant 0 : i32
    %c0_i32_1 = arith.constant 0 : i32
    return %c0_i32, %c0_i32_0 : i32, i32
  }
  func.func @transform_4(%arg0: i32) -> (i32, i32) {
    %c0_i32 = arith.constant 0 : i32
    %c0_i32_0 = arith.constant 0 : i32
    return %arg0, %c0_i32 : i32, i32
  }
}

</mosaic_0001>

<llo_original>
// kernel: tpu_custom_call.1
$region0: #{tpu_custom_call.1}
  #allocation0 [shape = 'u32[]', space=smem, size = 0x4, offset = 0x4, fixed_abs, tag = 'smem constant byte address 0x4 - core index']
  #allocation1 [shape = 'u32[72,128]{1,0:T(1,128)}', space=vmem, size = 0x9000, scoped, tag = 'internal scratch']
  %s0 = inlined_call_operand.hbm [shape: f32[4,128], index: 0, kind: input, shape index: {}]
  %s1 = inlined_call_operand.hbm [shape: f32[1,128], index: 1, kind: input, shape index: {}]
  %s2 = inlined_call_operand.vmem [shape: f32[1,128], index: 2, kind: input, shape index: {}]
  %s3 = inlined_call_operand.hbm [shape: f32[128,128], index: 3, kind: input, shape index: {}]
  %s4 = inlined_call_operand.hbm [shape: f32[4,128], index: 4, kind: output, shape index: {}]
  %s5 = sld [smem:[#allocation0]]
  $region38: #{tpu_custom_call.1} parent=0
    _
  %s7 = ssub.s32 1, %s5
  %s8 = scalar_select 0, %s7, %s5
  $region1: #{tpu_custom_call.1} parent=0
    #allocation2 [shape = 'u8[2048]{0}', space=vmem, size = 0x800, scoped, tag = 'input window, operand 0, single buffered']
    #allocation3 [shape = 's32[1]{0}', space=sflag, size = 0x4, scoped, tag = 'scoped memory for tpu_custom_call.1']
    #allocation4 [shape = 's32[1]{0}', space=sflag, size = 0x4, scoped, tag = 'scoped memory for tpu_custom_call.1']
    #allocation5 [shape = 'u8[512]{0}', space=vmem, size = 0x400, scoped, tag = 'input window, operand 1, single buffered']
    #allocation6 [shape = 's32[1]{0}', space=sflag, size = 0x4, scoped, tag = 'scoped memory for tpu_custom_call.1']
    #allocation7 [shape = 'u8[65536]{0}', space=vmem, size = 0x10000, scoped, tag = 'input window, operand 3, single buffered']
    #allocation8 [shape = 'u8[2048]{0}', space=vmem, size = 0x800, scoped, tag = 'output window, operand 0, single buffered']
    %9 = vsyncpa [#allocation3], 0
    %10 = vsyncpa [#allocation6], 0
    %11 = vsyncpa [#allocation4], 0
    // Predicated region
    $region2: #{tpu_custom_call.1} parent=1 // pred_check
      _
    $region3: #{tpu_custom_call.1} parent=1 // pred_check_branch
      %13 = sbr.rel (0) target = $region5
    $region4: #{tpu_custom_call.1} parent=1 // pred_region
      %15 = vsyncadd [#allocation3], 0
      %s17 = sshll.u32 %s0, 4
      %s18 = int_to_ptr.hbm [resolvable:$true] %s17
      %s19 = sshll.u32 [#allocation2], 4
      %s20 = int_to_ptr.vmem [resolvable:$true] %s19
      %22 = dma.hbm_to_vmem [thread:$0]  %s18, 64, %s20, [#allocation3]
    $region5: #{tpu_custom_call.1} parent=1 // pred_fallthru
      _
    // Predicated region
    $region6: #{tpu_custom_call.1} parent=1 // pred_check
      _
    $region7: #{tpu_custom_call.1} parent=1 // pred_check_branch
      %24 = sbr.rel (0) target = $region9
    $region8: #{tpu_custom_call.1} parent=1 // pred_region
      %26 = vsyncadd [#allocation6], 0
      %s28 = sshll.u32 %s1, 4
      %s29 = int_to_ptr.hbm [resolvable:$true] %s28
      %s30 = sshll.u32 [#allocation5], 4
      %s31 = int_to_ptr.vmem [resolvable:$true] %s30
      %33 = dma.hbm_to_vmem [thread:$0]  %s29, 16, %s31, [#allocation6]
    $region9: #{tpu_custom_call.1} parent=1 // pred_fallthru
      _
    // Predicated region
    $region10: #{tpu_custom_call.1} parent=1 // pred_check
      _
    $region11: #{tpu_custom_call.1} parent=1 // pred_check_branch
      %35 = sbr.rel (0) target = $region13
    $region12: #{tpu_custom_call.1} parent=1 // pred_region
      _
    $region13: #{tpu_custom_call.1} parent=1 // pred_fallthru
      _
    // Predicated region
    $region14: #{tpu_custom_call.1} parent=1 // pred_check
      _
    $region15: #{tpu_custom_call.1} parent=1 // pred_check_branch
      %37 = sbr.rel (0) target = $region17
    $region16: #{tpu_custom_call.1} parent=1 // pred_region
      %39 = vsyncadd [#allocation6], 0
      %s40 = sshll.u32 %s3, 4
      %s41 = int_to_ptr.hbm [resolvable:$true] %s40
      %s42 = sshll.u32 [#allocation7], 4
      %s43 = int_to_ptr.vmem [resolvable:$true] %s42
      %48 = dma.hbm_to_vmem [thread:$0]  %s41, 2048, %s43, [#allocation6], 128, 128, 8
    $region17: #{tpu_custom_call.1} parent=1 // pred_fallthru
      _
    // Predicated region
    $region18: #{tpu_custom_call.1} parent=1 // pred_check
      _
    $region19: #{tpu_custom_call.1} parent=1 // pred_check_branch
      %50 = sbr.rel (0) target = $region21
    $region20: #{tpu_custom_call.1} parent=1 // pred_region
      %52 = dma.done [#allocation3], 64
    $region21: #{tpu_custom_call.1} parent=1 // pred_fallthru
      _
    // Predicated region
    $region22: #{tpu_custom_call.1} parent=1 // pred_check
      _
    $region23: #{tpu_custom_call.1} parent=1 // pred_check_branch
      %54 = sbr.rel (0) target = $region25
    $region24: #{tpu_custom_call.1} parent=1 // pred_region
      %56 = dma.done [#allocation6], 16
    $region25: #{tpu_custom_call.1} parent=1 // pred_fallthru
      _
    // Predicated region
    $region26: #{tpu_custom_call.1} parent=1 // pred_check
      _
    $region27: #{tpu_custom_call.1} parent=1 // pred_check_branch
      %58 = sbr.rel (0) target = $region29
    $region28: #{tpu_custom_call.1} parent=1 // pred_region
      %60 = dma.done [#allocation6], 2048
    $region29: #{tpu_custom_call.1} parent=1 // pred_fallthru
      _
    %v61 = vld [vmem:[#allocation2] sm:$0xf]
    %v62 = vld [vmem:[#allocation7] sm:$0xff]
    %v63 = vld [vmem:[#allocation7 + $0x8] sm:$0xff]
    %v64 = vld [vmem:[#allocation7 + $0x10] sm:$0xff]
    %v65 = vld [vmem:[#allocation7 + $0x18] sm:$0xff]
    %v66 = vld [vmem:[#allocation7 + $0x20] sm:$0xff]
    %v67 = vld [vmem:[#allocation7 + $0x28] sm:$0xff]
    %v68 = vld [vmem:[#allocation7 + $0x30] sm:$0xff]
    %v69 = vld [vmem:[#allocation7 + $0x38] sm:$0xff]
    %v70 = vld [vmem:[#allocation7 + $0x40] sm:$0xff]
    %v71 = vld [vmem:[#allocation7 + $0x48] sm:$0xff]
    %v72 = vld [vmem:[#allocation7 + $0x50] sm:$0xff]
    %v73 = vld [vmem:[#allocation7 + $0x58] sm:$0xff]
    %v74 = vld [vmem:[#allocation7 + $0x60] sm:$0xff]
    %v75 = vld [vmem:[#allocation7 + $0x68] sm:$0xff]
    %v76 = vld [vmem:[#allocation7 + $0x70] sm:$0xff]
    %v77 = vld [vmem:[#allocation7 + $0x78] sm:$0xff]
    %78 = vmatpush.msra.mxu0 %v77
    %79 = vmatpush.msra.mxu0 %v76
    %80 = vmatpush.msra.mxu0 %v75
    %81 = vmatpush.msra.mxu0 %v74
    %82 = vmatpush.msra.mxu0 %v73
    %83 = vmatpush.msra.mxu0 %v72
    %84 = vmatpush.msra.mxu0 %v71
    %85 = vmatpush.msra.mxu0 %v70
    %86 = vmatpush.msra.mxu0 %v69
    %87 = vmatpush.msra.mxu0 %v68
    %88 = vmatpush.msra.mxu0 %v67
    %89 = vmatpush.msra.mxu0 %v66
    %90 = vmatpush.msra.mxu0 %v65
    %91 = vmatpush.msra.mxu0 %v64
    %92 = vmatpush.msra.mxu0 %v63
    %93 = vmatpush.msra.mxu0 %v62
    %94 = vmatmul.f32.gmra.mxu0 %v61
    %v95 = vpop.f32.mrf.mxu0
    %v96 = vadd.f32 0.0, %v95
    %97 = vdwg.mxu0
    %v98 = vmul.f32 %v96, 0.03125
    %v99 = vsub.f32 %v61, %v98
    %v100 = vmul.f32 %v99, %v99
    %101 = vmatpush.msra.mxu0 %v77
    %102 = vmatpush.msra.mxu0 %v76
    %103 = vmatpush.msra.mxu0 %v75
    %104 = vmatpush.msra.mxu0 %v74
    %105 = vmatpush.msra.mxu0 %v73
    %106 = vmatpush.msra.mxu0 %v72
    %107 = vmatpush.msra.mxu0 %v71
    %108 = vmatpush.msra.mxu0 %v70
    %109 = vmatpush.msra.mxu0 %v69
    %110 = vmatpush.msra.mxu0 %v68
    %111 = vmatpush.msra.mxu0 %v67
    %112 = vmatpush.msra.mxu0 %v66
    %113 = vmatpush.msra.mxu0 %v65
    %114 = vmatpush.msra.mxu0 %v64
    %115 = vmatpush.msra.mxu0 %v63
    %116 = vmatpush.msra.mxu0 %v62
    %117 = vmatmul.f32.gmra.mxu0 %v100
    %v118 = vpop.f32.mrf.mxu0
    %v119 = vadd.f32 0.0, %v118
    %120 = vdwg.mxu0
    %v121 = vmul.f32 %v119, 0.03125
    %v122 = vadd.f32 %v121, 1e-05
    %v123 = vrsqrt.pop %v122
    %v124 = vmul.f32 %v123, %v122
    %v125 = vmul.f32 %v124, %v123
    %v126 = vmul.f32 0.5, %v125
    %v127 = vsub.f32 1.5, %v126
    %v128 = vmul.f32 %v123, %v127
    %vm129 = vweird.f32 %v122
    %vm130 = vweird.f32 %v123
    %vm131 = vmor %vm129, %vm130
    %v132 = vsel %vm131, %v123, %v128
    %v133 = vmul.f32 %v99, %v132
    %v134 = vld [vmem:[#allocation5] sm:$0x1]
    %v136 = vperm.slane %v134, 0
    %v138 = vmul.f32 %v133, %v136
    %v139 = vld [vmem:[%s2] sm:$0x1]
    %v141 = vperm.slane %v139, 0
    %v143 = vadd.f32 %v138, %v141
    %144 = vst [vmem:[#allocation8] sm:$0xf] %v143
    // Predicated region
    $region30: #{tpu_custom_call.1} parent=1 // pred_check
      _
    $region31: #{tpu_custom_call.1} parent=1 // pred_check_branch
      %146 = sbr.rel (0) target = $region33
    $region32: #{tpu_custom_call.1} parent=1 // pred_region
      %148 = vsyncadd [#allocation4], 0
      %s150 = sshll.u32 [#allocation8], 4
      %s151 = int_to_ptr.vmem [resolvable:$true] %s150
      %s152 = sshll.u32 %s4, 4
      %s153 = int_to_ptr.hbm [resolvable:$true] %s152
      %155 = dma.vmem_to_hbm [thread:$0]  %s151, 64, %s153, [#allocation4]
    $region33: #{tpu_custom_call.1} parent=1 // pred_fallthru
      _
    // Predicated region
    $region34: #{tpu_custom_call.1} parent=1 // pred_check
      _
    $region35: #{tpu_custom_call.1} parent=1 // pred_check_branch
      %157 = sbr.rel (0) target = $region37
    $region36: #{tpu_custom_call.1} parent=1 // pred_region
      %159 = dma.done [#allocation4], 64
    $region37: #{tpu_custom_call.1} parent=1 // pred_fallthru
      _
    %160 = vsyncpa [#allocation3], 1
    %161 = vsyncpa [#allocation6], 1
    %162 = vsyncpa [#allocation4], 1

</llo_original>
